<compile_context>
chip_gen: v7x
topology: tpu7x:2x2x1
jax: 0.10.0
libtpu: 0.0.40
codegen_flags: <defaults>
</compile_context>

<pallas_src>
import math

import jax
import jax.numpy as jnp
from jax import lax
from jax.experimental import pallas as pl
from jax.experimental.pallas import tpu as pltpu


# -----------------------------------------------------------------------------
# small helpers
# -----------------------------------------------------------------------------
def _round_up(x: int, m: int) -> int:
    return ((x + m - 1) // m) * m


def _ceil_div(a: int, b: int) -> int:
    return -(-a // b)


def _vmem_capacity_bytes() -> int:
    """Physical VMEM per TensorCore; falls back to the smallest gen (v7x, 64 MiB)."""
    try:
        info = pltpu.get_tpu_info()
        cap = getattr(info, "vmem_capacity_bytes", None)
        if cap:
            return int(cap)
    except Exception:
        pass
    return 64 << 20


def _tile_vmem_bytes(tm: int, tn: int, tk: int, itemsize: int) -> int:
    # x, w, out tiles are double-buffered by the pipeline; acc is an f32 scratch.
    return (2 * tm * tk + 2 * tn * tk + 2 * tm * tn) * itemsize + tm * tn * 4


def _choose_tiles(M: int, N: int, K: int, itemsize: int, budget: int):
    """Pick (tm, tn, tk): (8,128)-aligned, shape-asymmetric, VMEM-budgeted."""
    tm_cap = min(2048, _round_up(M, 8))
    tn_cap = min(2048, _round_up(N, 128))
    tk_cap = min(2048, _round_up(K, 128))

    tm = min(512, tm_cap)
    tn = min(512, tn_cap)
    tk = min(1024, tk_cap)

    # Shrink (cheapest dims first) until the baseline working set fits.
    while _tile_vmem_bytes(tm, tn, tk, itemsize) > budget:
        if tk > 512:
            tk = max(128, tk // 2)
        elif tn > 256:
            tn = max(128, tn // 2)
        elif tm > 256:
            tm = max(8, _round_up(tm // 2, 8))
        elif tk > 128:
            tk = max(128, tk // 2)
        elif tn > 128:
            tn = max(128, tn // 2)
        elif tm > 8:
            tm = max(8, _round_up(tm // 2, 8))
        else:
            break

    # Grow while the working set still fits.  Small M (decode-style): the
    # weights already stream exactly once, so spend VMEM on tn/tk.  Large M:
    # bias toward a large tm (then tn) to cut the dominant re-fetch traffic.
    grow_order = ("tn", "tk", "tm") if M <= 256 else ("tm", "tn", "tk")
    caps = {"tm": tm_cap, "tn": tn_cap, "tk": tk_cap}
    cur = {"tm": tm, "tn": tn, "tk": tk}
    for name in grow_order * 4:
        new = min(caps[name], cur[name] * 2)
        if new == cur[name]:
            continue
        trial = dict(cur)
        trial[name] = new
        if _tile_vmem_bytes(trial["tm"], trial["tn"], trial["tk"], itemsize) <= budget:
            cur = trial
    tm, tn, tk = cur["tm"], cur["tn"], cur["tk"]

    # Keep >=2 parallel (M,N) tiles so v7x's two TensorCores both get work.
    if _ceil_div(M, tm) * _ceil_div(N, tn) < 2:
        if M >= 1024:
            tm = _round_up(_ceil_div(M, 2), 8)
        elif N >= 1024:
            tn = _round_up(_ceil_div(N, 2), 128)

    # Shrink each tile to the smallest aligned size with the same tile count:
    # minimizes the wrapper-pad HBM traffic and wasted MXU work on ragged dims.
    tm = _round_up(_ceil_div(M, _ceil_div(M, tm)), 8)
    tn = _round_up(_ceil_div(N, _ceil_div(N, tn)), 128)
    tk = _round_up(_ceil_div(K, _ceil_div(K, tk)), 128)
    return tm, tn, tk


# -----------------------------------------------------------------------------
# kernel
# -----------------------------------------------------------------------------
def _make_linear_kernel(has_bias: bool, mxu_dtype):
    def kernel(*refs):
        if has_bias:
            x_ref, w_ref, b_ref, o_ref, acc_ref = refs
        else:
            x_ref, w_ref, o_ref, acc_ref = refs
            b_ref = None
        k = pl.program_id(2)

        @pl.when(k == 0)
        def _():
            if b_ref is None:
                acc_ref[...] = jnp.zeros_like(acc_ref)
            else:
                # Fold the bias into the accumulator init: removes the add from
                # the last-k epilogue where the big output store already sits.
                acc_ref[...] = jnp.broadcast_to(
                    b_ref[...].astype(jnp.float32), acc_ref.shape)

        xv = x_ref[...]
        wv = w_ref[...]
        if mxu_dtype is not None:
            xv = xv.astype(mxu_dtype)
            wv = wv.astype(mxu_dtype)

        # Weight stays in native (out_features, in_features) layout; contract
        # both operands on their last (K) axis — no wrapper-side transpose,
        # no extra HBM pass over the weights.
        # TODO(synk): if a bundle dump shows a per-k-step XLU vxpose of the
        # weight tile once MXU-bound, pre-transpose the static weight once.
        acc_ref[...] += lax.dot_general(
            xv, wv,
            dimension_numbers=(((1,), (1,)), ((), ())),
            preferred_element_type=jnp.float32,
        )

        @pl.when(k == pl.num_programs(2) - 1)
        def _():
            o_ref[...] = acc_ref[...].astype(o_ref.dtype)

    return kernel


# -----------------------------------------------------------------------------
# wrapper
# -----------------------------------------------------------------------------
def linear_forward(x, weight, bias=None, *, mxu_bf16=False, use_pallas=None):
    """
    x:      (*, in_features)
    weight: (out_features, in_features)   -- PyTorch convention, used as-is
    bias:   (out_features,) or None
    returns (*, out_features)
    """
    out_features, in_features = weight.shape
    assert x.shape[-1] == in_features

    lead_shape = x.shape[:-1]
    M = math.prod(lead_shape) if lead_shape else 1
    K = in_features
    N = out_features

    # ---- tiny-problem fast path: padding + launch overhead dominates --------
    if use_pallas is None:
        use_pallas = (M * N * K) >= (1 << 18)
    if not use_pallas:
        y = jnp.einsum("...i,oi->...o", x, weight,
                       precision=lax.Precision.HIGHEST)
        if bias is not None:
            y = y + bias
        return y

    x2d = x.reshape(M, K)                       # flatten leading dims only

    itemsize = jnp.dtype(x.dtype).itemsize
    vmem_cap = _vmem_capacity_bytes()
    budget = int(vmem_cap * 0.7)                # headroom for compiler scratch
    tm, tn, tk = _choose_tiles(M, N, K, itemsize, budget)

    Mp, Np, Kp = _round_up(M, tm), _round_up(N, tn), _round_up(K, tk)

    # ---- pad operands so every grid tile is full and (8,128)-aligned --------
    if (Mp, Kp) != (M, K):
        x2d = jnp.pad(x2d, ((0, Mp - M), (0, Kp - K)))
    w_p = weight if (Np, Kp) == (N, K) else jnp.pad(weight, ((0, Np - N), (0, Kp - K)))

    grid_m, grid_n, grid_k = Mp // tm, Np // tn, Kp // tk
    grid = (grid_m, grid_n, grid_k)

    x_spec = pl.BlockSpec((tm, tk), lambda i, j, k: (i, k))
    w_spec = pl.BlockSpec((tn, tk), lambda i, j, k: (j, k))
    o_spec = pl.BlockSpec((tm, tn), lambda i, j, k: (i, j))

    # scheduling hint including the x / w re-fetch factors
    bytes_accessed = (Mp * Kp * grid_n + Np * Kp * grid_m + Mp * Np) * itemsize
    if bias is not None:
        bytes_accessed += Np * itemsize * grid_m
    cost = pl.CostEstimate(flops=2 * Mp * Np * Kp,
                           bytes_accessed=bytes_accessed,
                           transcendentals=0)

    vmem_need = _tile_vmem_bytes(tm, tn, tk, itemsize)
    vmem_limit = int(min(0.9 * vmem_cap,
                         max(32 << 20, 1.25 * vmem_need + (4 << 20))))
    cparams = pltpu.CompilerParams(
        dimension_semantics=("parallel", "parallel", "arbitrary"),
        vmem_limit_bytes=vmem_limit,
    )

    mxu_dtype = jnp.bfloat16 if mxu_bf16 else None
    kernel = _make_linear_kernel(bias is not None, mxu_dtype)

    in_specs = [x_spec, w_spec]
    operands = [x2d, w_p]
    if bias is not None:
        b_p = bias if Np == N else jnp.pad(bias, (0, Np - N))
        in_specs.append(pl.BlockSpec((1, tn), lambda i, j, k: (0, j)))
        operands.append(b_p.reshape(1, Np))

    y2d = pl.pallas_call(
        kernel,
        out_shape=jax.ShapeDtypeStruct((Mp, Np), x.dtype),
        grid_spec=pltpu.PrefetchScalarGridSpec(
            num_scalar_prefetch=0,
            grid=grid,
            in_specs=in_specs,
            out_specs=o_spec,
            scratch_shapes=[pltpu.VMEM((tm, tn), jnp.float32)],
        ),
        compiler_params=cparams,
        cost_estimate=cost,
    )(*operands)

    # slice padding back off and restore leading dims
    y2d = y2d[:M, :N]
    return y2d.reshape(*lead_shape, N)


def init_linear_params(key, in_features, out_features, bias=True):
    """Deterministic re-implementation of the module's init: kaiman * (2*randn - 1)."""
    kaiman = 1.0 / jnp.sqrt(jnp.float32(in_features))
    kw, kb = jax.random.split(key)
    weight = kaiman * (2.0 * jax.random.normal(
        kw, (out_features, in_features), dtype=jnp.float32) - 1.0)
    b = (kaiman * (2.0 * jax.random.normal(
        kb, (out_features,), dtype=jnp.float32) - 1.0) if bias else None)
    return weight, b


# -----------------------------------------------------------------------------
# demo / self-check
# -----------------------------------------------------------------------------
if __name__ == "__main__":
    key = jax.random.PRNGKey(0)
    k_x, k_p = jax.random.split(key)

    batch, seq, in_features, out_features = 2, 8, 32, 64

    x = jax.random.normal(k_x, (batch, seq, in_features), dtype=jnp.float32)
    weight, bias = init_linear_params(k_p, in_features, out_features, bias=True)

    def ref(xv, w, b=None):
        y = jnp.einsum("...i,oi->...o", xv, w, precision=lax.Precision.HIGHEST)
        return y if b is None else y + b

    # 1) small module-spec shape — auto path (tiny-problem fast path)
    y_small = jax.block_until_ready(linear_forward(x, weight, bias))
    assert y_small.shape == (batch, seq, out_features)
    assert jnp.allclose(y_small, ref(x, weight, bias), atol=1e-4, rtol=1e-4)

    # 2) same shape, forced through the Pallas kernel (with and without bias)
    y_p = jax.block_until_ready(linear_forward(x, weight, bias, use_pallas=True))
    assert jnp.allclose(y_p, ref(x, weight, bias), atol=1e-4, rtol=1e-4)
    y_nb = jax.block_until_ready(linear_forward(x, weight, None, use_pallas=True))
    assert jnp.allclose(y_nb, ref(x, weight), atol=1e-4, rtol=1e-4)

    # 3) ragged, larger leading dims — exercises the tiled grid + minimal-pad path
    x_big = jax.random.normal(k_x, (3, 300, in_features), dtype=jnp.float32)
    y_big = jax.block_until_ready(linear_forward(x_big, weight, bias))
    assert y_big.shape == (3, 300, out_features)
    assert jnp.allclose(y_big, ref(x_big, weight, bias), atol=1e-4, rtol=1e-4)

    print("KERNEL_OK")
</pallas_src>

<mosaic_0001>
module attributes {stable_mosaic.version = 11 : i64} {
  func.func @kernel(%arg0: i32, %arg1: i32, %arg2: i32, %arg3: memref<16x128xf32, #tpu.memory_space<vmem>>, %arg4: memref<128x128xf32, #tpu.memory_space<vmem>>, %arg5: memref<1x128xf32, #tpu.memory_space<vmem>>, %arg6: memref<16x128xf32, #tpu.memory_space<vmem>>, %arg7: memref<16x128xf32, #tpu.memory_space<vmem>>) attributes {dimension_semantics = [#tpu.dimension_semantics<parallel>, #tpu.dimension_semantics<parallel>, #tpu.dimension_semantics<arbitrary>], iteration_bounds = array<i64: 1, 1, 1>, scalar_prefetch = 0 : i64, scratch_operands = 1 : i64, tpu.core_type = #tpu.core_type<tc>, window_params = [{transform_indices = @transform_0, window_bounds = array<i64: 16, 128>}, {transform_indices = @transform_1, window_bounds = array<i64: 128, 128>}, {transform_indices = @transform_2, window_bounds = array<i64: 1, 128>}, {transform_indices = @transform_3, window_bounds = array<i64: 16, 128>}]} {
    %c0_i32 = arith.constant 0 : i32
    %0 = arith.cmpi eq, %arg2, %c0_i32 : i32
    %1 = arith.extui %0 : i1 to i32
    %c0_i32_0 = arith.constant 0 : i32
    %2 = arith.cmpi ne, %1, %c0_i32_0 : i32
    scf.if %2 {
      %c0_10 = arith.constant 0 : index
      %c0_11 = arith.constant 0 : index
      %12 = vector.load %arg5[%c0_10, %c0_11] : memref<1x128xf32, #tpu.memory_space<vmem>>, vector<1x128xf32>
      %13 = vector.shape_cast %12 : vector<1x128xf32> to vector<1x128xf32>
      %14 = vector.broadcast %13 : vector<1x128xf32> to vector<16x128xf32>
      %c0_12 = arith.constant 0 : index
      %c0_13 = arith.constant 0 : index
      %15 = vector.load %arg7[%c0_12, %c0_13] : memref<16x128xf32, #tpu.memory_space<vmem>>, vector<16x128xf32>
      tpu.vector_store %arg7[%c0_12, %c0_13], %14 {strides = array<i32>} : memref<16x128xf32, #tpu.memory_space<vmem>>, vector<16x128xf32>,
    } else {
    }
    %c0 = arith.constant 0 : index
    %c0_1 = arith.constant 0 : index
    %3 = vector.load %arg3[%c0, %c0_1] : memref<16x128xf32, #tpu.memory_space<vmem>>, vector<16x128xf32>
    %c0_2 = arith.constant 0 : index
    %c0_3 = arith.constant 0 : index
    %4 = vector.load %arg4[%c0_2, %c0_3] : memref<128x128xf32, #tpu.memory_space<vmem>>, vector<128x128xf32>
    %c0_4 = arith.constant 0 : index
    %c0_5 = arith.constant 0 : index
    %5 = vector.load %arg7[%c0_4, %c0_5] : memref<16x128xf32, #tpu.memory_space<vmem>>, vector<16x128xf32>
    %cst = arith.constant dense<0.000000e+00> : vector<16x128xf32>
    %6 = tpu.matmul %3, %4, %cst {dimension_numbers = #tpu.dot_dimension_numbers<[1], [1], [0], [0], [0, 0, 1, 0], [], []>} : vector<16x128xf32>, vector<128x128xf32>, vector<16x128xf32> -> vector<16x128xf32>
    %7 = arith.addf %5, %6 : vector<16x128xf32>
    %c0_6 = arith.constant 0 : index
    %c0_7 = arith.constant 0 : index
    %8 = vector.load %arg7[%c0_6, %c0_7] : memref<16x128xf32, #tpu.memory_space<vmem>>, vector<16x128xf32>
    tpu.vector_store %arg7[%c0_6, %c0_7], %7 {strides = array<i32>} : memref<16x128xf32, #tpu.memory_space<vmem>>, vector<16x128xf32>,
    %c0_i32_8 = arith.constant 0 : i32
    %9 = arith.cmpi eq, %arg2, %c0_i32_8 : i32
    %10 = arith.extui %9 : i1 to i32
    %c0_i32_9 = arith.constant 0 : i32
    %11 = arith.cmpi ne, %10, %c0_i32_9 : i32
    scf.if %11 {
      %c0_10 = arith.constant 0 : index
      %c0_11 = arith.constant 0 : index
      %12 = vector.load %arg7[%c0_10, %c0_11] : memref<16x128xf32, #tpu.memory_space<vmem>>, vector<16x128xf32>
      %c0_12 = arith.constant 0 : index
      %c0_13 = arith.constant 0 : index
      %13 = vector.load %arg6[%c0_12, %c0_13] : memref<16x128xf32, #tpu.memory_space<vmem>>, vector<16x128xf32>
      tpu.vector_store %arg6[%c0_12, %c0_13], %12 {strides = array<i32>} : memref<16x128xf32, #tpu.memory_space<vmem>>, vector<16x128xf32>,
    } else {
    }
    return
  }
  func.func @transform_0(%arg0: i32, %arg1: i32, %arg2: i32) -> (i32, i32) {
    %c0_i32 = arith.constant 0 : i32
    return %arg0, %arg2 : i32, i32
  }
  func.func @transform_1(%arg0: i32, %arg1: i32, %arg2: i32) -> (i32, i32) {
    %c0_i32 = arith.constant 0 : i32
    return %arg1, %arg2 : i32, i32
  }
  func.func @transform_2(%arg0: i32, %arg1: i32, %arg2: i32) -> (i32, i32) {
    %c0_i32 = arith.constant 0 : i32
    %c0_i32_0 = arith.constant 0 : i32
    return %c0_i32, %arg1 : i32, i32
  }
  func.func @transform_3(%arg0: i32, %arg1: i32, %arg2: i32) -> (i32, i32) {
    %c0_i32 = arith.constant 0 : i32
    return %arg0, %arg1 : i32, i32
  }
}

</mosaic_0001>

<llo_original>
// kernel: tpu_custom_call.1
$region0: #{tpu_custom_call.1}
  #allocation0 [shape = 'u32[]', space=smem, size = 0x4, offset = 0x4, fixed_abs, tag = 'smem constant byte address 0x4 - core index']
  #allocation1 [shape = 'u32[144,128]{1,0:T(1,128)}', space=vmem, size = 0x12000, scoped, tag = 'internal scratch']
  #allocation2 [shape = 'f32[16,128]{1,0:T(8,128)}', space=vmem, size = 0x2000, scoped, tag = 'scratch operand']
  %s0 = inlined_call_operand.hbm [shape: f32[16,128], index: 0, kind: input, shape index: {}]
  %s1 = inlined_call_operand.hbm [shape: f32[128,128], index: 1, kind: input, shape index: {}]
  %s2 = inlined_call_operand.vmem [shape: f32[1,128], index: 2, kind: input, shape index: {}]
  %s3 = inlined_call_operand.hbm [shape: f32[16,128], index: 3, kind: output, shape index: {}]
  %s4 = sld [smem:[#allocation0]]
  $region38: #{tpu_custom_call.1} parent=0
    _
  %s6 = ssub.s32 1, %s4
  %s7 = scalar_select 0, %s6, %s4
  $region1: #{tpu_custom_call.1} parent=0
    #allocation3 [shape = 'u8[8192]{0}', space=vmem, size = 0x2000, scoped, tag = 'input window, operand 0, single buffered']
    #allocation4 [shape = 's32[1]{0}', space=sflag, size = 0x4, scoped, tag = 'scoped memory for tpu_custom_call.1']
    #allocation5 [shape = 's32[1]{0}', space=sflag, size = 0x4, scoped, tag = 'scoped memory for tpu_custom_call.1']
    #allocation6 [shape = 'u8[65536]{0}', space=vmem, size = 0x10000, scoped, tag = 'input window, operand 1, single buffered']
    #allocation7 [shape = 's32[1]{0}', space=sflag, size = 0x4, scoped, tag = 'scoped memory for tpu_custom_call.1']
    #allocation8 [shape = 'u8[8192]{0}', space=vmem, size = 0x2000, scoped, tag = 'output window, operand 0, single buffered']
    %8 = vsyncpa [#allocation4], 0
    %9 = vsyncpa [#allocation7], 0
    %10 = vsyncpa [#allocation5], 0
    // Predicated region
    $region2: #{tpu_custom_call.1} parent=1 // pred_check
      _
    $region3: #{tpu_custom_call.1} parent=1 // pred_check_branch
      %12 = sbr.rel (0) target = $region5
    $region4: #{tpu_custom_call.1} parent=1 // pred_region
      %s14 = ssub.s32 256, 256
      %15 = vsyncadd [#allocation4], %s14
      %s16 = sshll.u32 [#allocation3], 4
      %s17 = int_to_ptr.vmem [resolvable:$true] %s16
      %22 = dma.hbm_to_vmem [thread:$0]  %s0, 256, %s17, [#allocation4], 128, 128, 8
    $region5: #{tpu_custom_call.1} parent=1 // pred_fallthru
      _
    // Predicated region
    $region6: #{tpu_custom_call.1} parent=1 // pred_check
      _
    $region7: #{tpu_custom_call.1} parent=1 // pred_check_branch
      %24 = sbr.rel (0) target = $region9
    $region8: #{tpu_custom_call.1} parent=1 // pred_region
      %s26 = ssub.s32 2048, 2048
      %27 = vsyncadd [#allocation7], %s26
      %s28 = sshll.u32 [#allocation6], 4
      %s29 = int_to_ptr.vmem [resolvable:$true] %s28
      %34 = dma.hbm_to_vmem [thread:$0]  %s1, 2048, %s29, [#allocation7], 128, 128, 8
    $region9: #{tpu_custom_call.1} parent=1 // pred_fallthru
      _
    // Predicated region
    $region10: #{tpu_custom_call.1} parent=1 // pred_check
      _
    $region11: #{tpu_custom_call.1} parent=1 // pred_check_branch
      %36 = sbr.rel (0) target = $region13
    $region12: #{tpu_custom_call.1} parent=1 // pred_region
      _
    $region13: #{tpu_custom_call.1} parent=1 // pred_fallthru
      _
    // Predicated region
    $region14: #{tpu_custom_call.1} parent=1 // pred_check
      _
    $region15: #{tpu_custom_call.1} parent=1 // pred_check_branch
      %38 = sbr.rel (0) target = $region17
    $region16: #{tpu_custom_call.1} parent=1 // pred_region
      %39 = dma.done [#allocation4], 256
    $region17: #{tpu_custom_call.1} parent=1 // pred_fallthru
      _
    // Predicated region
    $region18: #{tpu_custom_call.1} parent=1 // pred_check
      _
    $region19: #{tpu_custom_call.1} parent=1 // pred_check_branch
      %41 = sbr.rel (0) target = $region21
    $region20: #{tpu_custom_call.1} parent=1 // pred_region
      %42 = dma.done [#allocation7], 2048
    $region21: #{tpu_custom_call.1} parent=1 // pred_fallthru
      _
    %p43 = scmp.eq.s32.totalorder 0, 0
    // Predicated region
    $region22: #{tpu_custom_call.1} parent=1 // pred_check
      %p44 = pneg %p43
    $region23: #{tpu_custom_call.1} parent=1 // pred_check_branch
      %46 = sbr.rel (%p44) target = $region25
    $region24: #{tpu_custom_call.1} parent=1 // pred_region
      %v47 = vld [vmem:[%s2] sm:$0x1]
      %v49 = vlaneseq
      %v50 = vshrl.u32 %v49, 7
      %v51 = vsub.s32 0, %v50
      %v52 = vrot.slane %v47, %v51
      %54 = vst [vmem:[#allocation2] sm:$0xff] %v52
      %55 = vst [vmem:[#allocation2 + $0x8] sm:$0xff] %v52
    $region25: #{tpu_custom_call.1} parent=1 // pred_fallthru
      _
    %v56 = vld [vmem:[#allocation3] sm:$0xff]
    %v57 = vld [vmem:[#allocation3 + $0x8] sm:$0xff]
    %v58 = vld [vmem:[#allocation6] sm:$0xff]
    %v59 = vld [vmem:[#allocation6 + $0x8] sm:$0xff]
    %v60 = vld [vmem:[#allocation6 + $0x10] sm:$0xff]
    %v61 = vld [vmem:[#allocation6 + $0x18] sm:$0xff]
    %v62 = vld [vmem:[#allocation6 + $0x20] sm:$0xff]
    %v63 = vld [vmem:[#allocation6 + $0x28] sm:$0xff]
    %v64 = vld [vmem:[#allocation6 + $0x30] sm:$0xff]
    %v65 = vld [vmem:[#allocation6 + $0x38] sm:$0xff]
    %v66 = vld [vmem:[#allocation6 + $0x40] sm:$0xff]
    %v67 = vld [vmem:[#allocation6 + $0x48] sm:$0xff]
    %v68 = vld [vmem:[#allocation6 + $0x50] sm:$0xff]
    %v69 = vld [vmem:[#allocation6 + $0x58] sm:$0xff]
    %v70 = vld [vmem:[#allocation6 + $0x60] sm:$0xff]
    %v71 = vld [vmem:[#allocation6 + $0x68] sm:$0xff]
    %v72 = vld [vmem:[#allocation6 + $0x70] sm:$0xff]
    %v73 = vld [vmem:[#allocation6 + $0x78] sm:$0xff]
    %v74 = vld [vmem:[#allocation2] sm:$0xff]
    %v75 = vld [vmem:[#allocation2 + $0x8] sm:$0xff]
    %76 = vmatprep.subr.mxu0 0.0
    %77 = vmatpush1.xpose.msra.mxu0 %v58
    %78 = vmatprep.subr.mxu0 0.0
    %79 = vmatpush1.xpose.msra.mxu0 %v59
    %80 = vmatprep.subr.mxu0 0.0
    %81 = vmatpush1.xpose.msra.mxu0 %v60
    %82 = vmatprep.subr.mxu0 0.0
    %83 = vmatpush1.xpose.msra.mxu0 %v61
    %84 = vmatprep.subr.mxu0 0.0
    %85 = vmatpush1.xpose.msra.mxu0 %v62
    %86 = vmatprep.subr.mxu0 0.0
    %87 = vmatpush1.xpose.msra.mxu0 %v63
    %88 = vmatprep.subr.mxu0 0.0
    %89 = vmatpush1.xpose.msra.mxu0 %v64
    %90 = vmatprep.subr.mxu0 0.0
    %91 = vmatpush1.xpose.msra.mxu0 %v65
    %92 = vmatprep.subr.mxu0 0.0
    %93 = vmatpush1.xpose.msra.mxu0 %v66
    %94 = vmatprep.subr.mxu0 0.0
    %95 = vmatpush1.xpose.msra.mxu0 %v67
    %96 = vmatprep.subr.mxu0 0.0
    %97 = vmatpush1.xpose.msra.mxu0 %v68
    %98 = vmatprep.subr.mxu0 0.0
    %99 = vmatpush1.xpose.msra.mxu0 %v69
    %100 = vmatprep.subr.mxu0 0.0
    %101 = vmatpush1.xpose.msra.mxu0 %v70
    %102 = vmatprep.subr.mxu0 0.0
    %103 = vmatpush1.xpose.msra.mxu0 %v71
    %104 = vmatprep.subr.mxu0 0.0
    %105 = vmatpush1.xpose.msra.mxu0 %v72
    %106 = vmatprep.subr.mxu0 0.0
    %107 = vmatpush1.xpose.msra.mxu0 %v73
    %108 = vmatprep.subr.mxu0 0.0
    %109 = vmatpush1.xpose.msra.mxu0 0.0
    %110 = vmatprep.subr.mxu0 0.0
    %111 = vmatpush1.xpose.msra.mxu0 0.0
    %112 = vmatprep.subr.mxu0 0.0
    %113 = vmatpush1.xpose.msra.mxu0 0.0
    %114 = vmatprep.subr.mxu0 0.0
    %115 = vmatpush1.xpose.msra.mxu0 0.0
    %116 = vmatprep.subr.mxu0 0.0
    %117 = vmatpush1.xpose.msra.mxu0 0.0
    %118 = vmatprep.subr.mxu0 0.0
    %119 = vmatpush1.xpose.msra.mxu0 0.0
    %120 = vmatprep.subr.mxu0 0.0
    %121 = vmatpush1.xpose.msra.mxu0 0.0
    %122 = vmatprep.subr.mxu0 0.0
    %123 = vmatpush1.xpose.msra.mxu0 0.0
    %124 = vmatprep.subr.mxu0 0.0
    %125 = vmatpush1.xpose.msra.mxu0 0.0
    %126 = vmatprep.subr.mxu0 0.0
    %127 = vmatpush1.xpose.msra.mxu0 0.0
    %128 = vmatprep.subr.mxu0 0.0
    %129 = vmatpush1.xpose.msra.mxu0 0.0
    %130 = vmatprep.subr.mxu0 0.0
    %131 = vmatpush1.xpose.msra.mxu0 0.0
    %132 = vmatprep.subr.mxu0 0.0
    %133 = vmatpush1.xpose.msra.mxu0 0.0
    %134 = vmatprep.subr.mxu0 0.0
    %135 = vmatpush1.xpose.msra.mxu0 0.0
    %136 = vmatprep.subr.mxu0 0.0
    %137 = vmatpush1.xpose.msra.mxu0 0.0
    %138 = vmatprep.subr.mxu0 0.0
    %139 = vmatpush1.xpose.msra.mxu0 0.0
    %140 = vmatprep.mubr.f32.mxu0 0.0
    %141 = vmatmul.mubr.f32.gmra.mrb[0].mxu0 %v56
    %v142 = vpop.f32.mrb[0].mxu0
    %v143 = vadd.f32 0.0, %v142
    %v144 = vpop.f32.mrb[0].mxu0
    %145 = vmatprep.mubr.f32.mxu0 0.0
    %146 = vmatmul.mubr.f32.gmra.mrb[0].mxu0 %v57
    %v147 = vpop.f32.mrb[0].mxu0
    %v148 = vadd.f32 0.0, %v147
    %v149 = vpop.f32.mrb[0].mxu0
    %150 = vdwg.mxu0
    %v151 = vadd.f32 %v74, %v143
    %v152 = vadd.f32 %v75, %v148
    %153 = vst [vmem:[#allocation2] sm:$0xff] %v151
    %154 = vst [vmem:[#allocation2 + $0x8] sm:$0xff] %v152
    // Predicated region
    $region26: #{tpu_custom_call.1} parent=1 // pred_check
      %p155 = pneg %p43
    $region27: #{tpu_custom_call.1} parent=1 // pred_check_branch
      %157 = sbr.rel (%p155) target = $region29
    $region28: #{tpu_custom_call.1} parent=1 // pred_region
      %v158 = vld [vmem:[#allocation2] sm:$0xff]
      %v159 = vld [vmem:[#allocation2 + $0x8] sm:$0xff]
      %160 = vst [vmem:[#allocation8] sm:$0xff] %v158
      %161 = vst [vmem:[#allocation8 + $0x8] sm:$0xff] %v159
    $region29: #{tpu_custom_call.1} parent=1 // pred_fallthru
      _
    // Predicated region
    $region30: #{tpu_custom_call.1} parent=1 // pred_check
      _
    $region31: #{tpu_custom_call.1} parent=1 // pred_check_branch
      %163 = sbr.rel (0) target = $region33
    $region32: #{tpu_custom_call.1} parent=1 // pred_region
      %s165 = ssub.s32 256, 256
      %166 = vsyncadd [#allocation5], %s165
      %s167 = sshll.u32 [#allocation8], 4
      %s168 = int_to_ptr.vmem [resolvable:$true] %s167
      %173 = dma.vmem_to_hbm [thread:$0]  %s168, 256, %s3, [#allocation5], 128, 128, 8
    $region33: #{tpu_custom_call.1} parent=1 // pred_fallthru
      _
    // Predicated region
    $region34: #{tpu_custom_call.1} parent=1 // pred_check
      _
    $region35: #{tpu_custom_call.1} parent=1 // pred_check_branch
      %175 = sbr.rel (0) target = $region37
    $region36: #{tpu_custom_call.1} parent=1 // pred_region
      %176 = dma.done [#allocation5], 256
    $region37: #{tpu_custom_call.1} parent=1 // pred_fallthru
      _
    %177 = vsyncpa [#allocation4], 1
    %178 = vsyncpa [#allocation7], 1
    %179 = vsyncpa [#allocation5], 1

</llo_original>
